<compile_context>
chip_gen: v6e
topology: v6e:2x2x1
jax: 0.10.0
libtpu: 0.0.40
codegen_flags: <defaults>
</compile_context>

<pallas_src>
import functools
import math

import jax
import jax.numpy as jnp
from jax.experimental import pallas as pl
from jax.experimental.pallas import tpu as pltpu


def _tail_value_kernel(x_cand_ref, x_comp_ref, out_ref, rank_acc_ref, *, k, tm, tn):
    i = pl.program_id(0)          # candidate-tile index   ("parallel")
    j = pl.program_id(1)          # comparator-tile index  ("arbitrary", reduction)

    @pl.when(j == 0)
    def _init():
        rank_acc_ref[...] = jnp.zeros_like(rank_acc_ref)

    cand = x_cand_ref[...]                                        # (tm, 1)
    idx_i = i * tm + jax.lax.broadcasted_iota(jnp.int32, (tm, 1), 0)

    # Partial stable-rank counts, accumulated lane-dense in (tm, 128).
    # Indicator tiles stay transient in vregs (128-lane chunks, pure VPU work).
    acc = jnp.zeros((tm, 128), jnp.float32)
    j_base = j * tn
    for c in range(tn // 128):
        comp_c = x_comp_ref[:, c * 128:(c + 1) * 128]             # (1, 128)
        idx_j = (j_base + c * 128) + jax.lax.broadcasted_iota(
            jnp.int32, (1, 128), 1)
        less = comp_c < cand                                      # (tm, 128)
        tie = (comp_c == cand) & (idx_j < idx_i)                  # stable tie-break
        acc = acc + (less | tie).astype(jnp.float32)
    rank_acc_ref[...] += acc

    @pl.when(j == pl.num_programs(1) - 1)
    def _finalize():
        # Single cross-lane reduce per candidate tile, only at finalize.
        rank = jnp.sum(rank_acc_ref[...], axis=1, keepdims=True)  # (tm, 1)
        selected = rank < jnp.float32(k)
        partial = jnp.sum(jnp.where(selected, cand, jnp.float32(0.0)))
        out_ref[...] = jnp.broadcast_to(partial, out_ref.shape)


def tail_value(portfolio_value: jax.Array, alpha: float, *, tm: int = 256,
               tn: int = 512) -> jax.Array:
    """Mean of the k = int(alpha * N) smallest elements of a 1-D vector."""
    n = portfolio_value.shape[0]
    k = int(alpha * n)
    if k <= 0:
        raise ValueError("alpha * N must be >= 1")

    # Pad to lane multiple, clamp tiles to the problem size, then pad further so
    # both tile sizes divide the padded length evenly.
    npad = -(-n // 128) * 128
    tm = max(128, (min(tm, npad) // 128) * 128)
    tn = max(128, (min(tn, npad) // 128) * 128)
    step = (tm * tn) // math.gcd(tm, tn)
    npad = -(-npad // step) * step
    num_i = npad // tm
    num_j = npad // tn

    x = portfolio_value.astype(jnp.float32)
    x = jnp.pad(x, (0, npad - n), constant_values=jnp.inf)   # pads never selected

    x_cand = x.reshape(npad, 1)    # candidate values (block resident across j)
    x_comp = x.reshape(1, npad)    # comparator values (lane-dense stream over j)

    out = pl.pallas_call(
        functools.partial(_tail_value_kernel, k=k, tm=tm, tn=tn),
        out_shape=jax.ShapeDtypeStruct((num_i, 8, 128), jnp.float32),
        grid_spec=pltpu.PrefetchScalarGridSpec(
            num_scalar_prefetch=0,
            grid=(num_i, num_j),
            in_specs=[
                pl.BlockSpec((tm, 1), lambda i, j: (i, 0)),   # candidates
                pl.BlockSpec((1, tn), lambda i, j: (0, j)),   # comparators
            ],
            out_specs=pl.BlockSpec((1, 8, 128), lambda i, j: (i, 0, 0)),
            scratch_shapes=[pltpu.VMEM((tm, 128), jnp.float32)],
        ),
        compiler_params=pltpu.CompilerParams(
            dimension_semantics=("parallel", "arbitrary"),
        ),
    )(x_cand, x_comp)

    # Per-i-tile partial sums of the selected (bottom-k) values -> mean.
    return jnp.sum(out[:, 0, 0]) / jnp.float32(k)


if __name__ == "__main__":
    # Small case (single tile).
    alpha = 0.25
    n = 16
    key = jax.random.PRNGKey(0)
    portfolio_value = jax.random.normal(key, (n,), dtype=jnp.float32)

    result = tail_value(portfolio_value, alpha)
    jax.block_until_ready(result)

    k = int(alpha * n)
    ref = jnp.mean(jnp.sort(portfolio_value)[:k])
    assert jnp.allclose(result, ref, atol=1e-6), (result, ref)

    # Larger case that exercises the multi-tile grid (num_i > 1, num_j > 1).
    n2, alpha2 = 2000, 0.1
    pv2 = jax.random.normal(jax.random.PRNGKey(1), (n2,), dtype=jnp.float32)
    r2 = tail_value(pv2, alpha2)
    jax.block_until_ready(r2)
    k2 = int(alpha2 * n2)
    ref2 = jnp.mean(jnp.sort(pv2)[:k2])
    assert jnp.allclose(r2, ref2, atol=1e-5, rtol=1e-5), (r2, ref2)

    print("KERNEL_OK")
</pallas_src>

<mosaic_0001>
module attributes {stable_mosaic.version = 11 : i64} {
  func.func @_tail_value_kernel(%arg0: i32, %arg1: i32, %arg2: memref<128x1xf32, #tpu.memory_space<vmem>>, %arg3: memref<1x128xf32, #tpu.memory_space<vmem>>, %arg4: memref<1x8x128xf32, #tpu.memory_space<vmem>>, %arg5: memref<128x128xf32, #tpu.memory_space<vmem>>) attributes {dimension_semantics = [#tpu.dimension_semantics<parallel>, #tpu.dimension_semantics<arbitrary>], iteration_bounds = array<i64: 1, 1>, scalar_prefetch = 0 : i64, scratch_operands = 1 : i64, tpu.core_type = #tpu.core_type<tc>, window_params = [{transform_indices = @transform_0, window_bounds = array<i64: 128, 1>}, {transform_indices = @transform_1, window_bounds = array<i64: 1, 128>}, {transform_indices = @transform_2, window_bounds = array<i64: 1, 8, 128>}]} {
    %c0_i32 = arith.constant 0 : i32
    %0 = arith.cmpi eq, %arg1, %c0_i32 : i32
    %1 = arith.extui %0 : i1 to i32
    %c0_i32_0 = arith.constant 0 : i32
    %2 = arith.cmpi ne, %1, %c0_i32_0 : i32
    scf.if %2 {
      %cst_12 = arith.constant 0.000000e+00 : f32
      %35 = vector.broadcast %cst_12 : f32 to vector<128x128xf32>
      %c0_13 = arith.constant 0 : index
      %c0_14 = arith.constant 0 : index
      %36 = vector.load %arg5[%c0_13, %c0_14] : memref<128x128xf32, #tpu.memory_space<vmem>>, vector<128x128xf32>
      tpu.vector_store %arg5[%c0_13, %c0_14], %35 {strides = array<i32>} : memref<128x128xf32, #tpu.memory_space<vmem>>, vector<128x128xf32>,
    } else {
    }
    %c0 = arith.constant 0 : index
    %c0_1 = arith.constant 0 : index
    %3 = vector.load %arg2[%c0, %c0_1] : memref<128x1xf32, #tpu.memory_space<vmem>>, vector<128x1xf32>
    %c128_i32 = arith.constant 128 : i32
    %4 = arith.muli %arg0, %c128_i32 : i32
    %5 = tpu.iota {dimensions = array<i32: 0>} : vector<128x1xi32>
    %6 = vector.broadcast %4 : i32 to vector<128x1xi32>
    %7 = arith.addi %6, %5 : vector<128x1xi32>
    %cst = arith.constant 0.000000e+00 : f32
    %8 = vector.broadcast %cst : f32 to vector<128x128xf32>
    %c128_i32_2 = arith.constant 128 : i32
    %9 = arith.muli %arg1, %c128_i32_2 : i32
    %c0_3 = arith.constant 0 : index
    %c0_4 = arith.constant 0 : index
    %10 = vector.load %arg3[%c0_3, %c0_4] : memref<1x128xf32, #tpu.memory_space<vmem>>, vector<1x128xf32>
    %c0_i32_5 = arith.constant 0 : i32
    %11 = arith.addi %9, %c0_i32_5 : i32
    %12 = tpu.iota {dimensions = array<i32: 1>} : vector<1x128xi32>
    %13 = vector.broadcast %11 : i32 to vector<1x128xi32>
    %14 = arith.addi %13, %12 : vector<1x128xi32>
    %15 = vector.broadcast %10 : vector<1x128xf32> to vector<128x128xf32>
    %16 = vector.broadcast %3 : vector<128x1xf32> to vector<128x128xf32>
    %17 = arith.cmpf olt, %15, %16 : vector<128x128xf32>
    %18 = vector.broadcast %10 : vector<1x128xf32> to vector<128x128xf32>
    %19 = vector.broadcast %3 : vector<128x1xf32> to vector<128x128xf32>
    %20 = arith.cmpf oeq, %18, %19 : vector<128x128xf32>
    %21 = vector.broadcast %14 : vector<1x128xi32> to vector<128x128xi32>
    %22 = vector.broadcast %7 : vector<128x1xi32> to vector<128x128xi32>
    %23 = arith.cmpi slt, %21, %22 : vector<128x128xi32>
    %24 = arith.andi %20, %23 : vector<128x128xi1>
    %25 = arith.ori %17, %24 : vector<128x128xi1>
    %26 = arith.extui %25 : vector<128x128xi1> to vector<128x128xi32>
    %27 = arith.sitofp %26 : vector<128x128xi32> to vector<128x128xf32>
    %28 = arith.addf %8, %27 : vector<128x128xf32>
    %c0_6 = arith.constant 0 : index
    %c0_7 = arith.constant 0 : index
    %29 = vector.load %arg5[%c0_6, %c0_7] : memref<128x128xf32, #tpu.memory_space<vmem>>, vector<128x128xf32>
    %30 = arith.addf %29, %28 : vector<128x128xf32>
    %c0_8 = arith.constant 0 : index
    %c0_9 = arith.constant 0 : index
    %31 = vector.load %arg5[%c0_8, %c0_9] : memref<128x128xf32, #tpu.memory_space<vmem>>, vector<128x128xf32>
    tpu.vector_store %arg5[%c0_8, %c0_9], %30 {strides = array<i32>} : memref<128x128xf32, #tpu.memory_space<vmem>>, vector<128x128xf32>,
    %c0_i32_10 = arith.constant 0 : i32
    %32 = arith.cmpi eq, %arg1, %c0_i32_10 : i32
    %33 = arith.extui %32 : i1 to i32
    %c0_i32_11 = arith.constant 0 : i32
    %34 = arith.cmpi ne, %33, %c0_i32_11 : i32
    scf.if %34 {
      %c0_12 = arith.constant 0 : index
      %c0_13 = arith.constant 0 : index
      %35 = vector.load %arg5[%c0_12, %c0_13] : memref<128x128xf32, #tpu.memory_space<vmem>>, vector<128x128xf32>
      %cst_14 = arith.constant dense<0.000000e+00> : vector<128xf32>
      %36 = vector.multi_reduction <add>, %35, %cst_14 [1] : vector<128x128xf32> to vector<128xf32>
      %37 = vector.shape_cast %36 : vector<128xf32> to vector<128x1xf32>
      %cst_15 = arith.constant 4.000000e+00 : f32
      %38 = vector.broadcast %cst_15 : f32 to vector<128x1xf32>
      %39 = arith.cmpf olt, %37, %38 : vector<128x1xf32>
      %cst_16 = arith.constant 0.000000e+00 : f32
      %40 = vector.broadcast %cst_16 : f32 to vector<128x1xf32>
      %41 = arith.select %39, %3, %40 : vector<128x1xi1>, vector<128x1xf32>
      %42 = vector.shape_cast %41 : vector<128x1xf32> to vector<1x128x1xf32>
      %cst_17 = arith.constant dense<0.000000e+00> : vector<1xf32>
      %43 = vector.multi_reduction <add>, %42, %cst_17 [1, 2] : vector<1x128x1xf32> to vector<1xf32>
      %44 = vector.shape_cast %43 : vector<1xf32> to vector<1x1x1xf32>
      %45 = vector.extract %44[0, 0, 0] : f32 from vector<1x1x1xf32>
      %46 = vector.broadcast %45 : f32 to vector<1x8x128xf32>
      %c0_18 = arith.constant 0 : index
      %c0_19 = arith.constant 0 : index
      %c0_20 = arith.constant 0 : index
      %47 = vector.load %arg4[%c0_18, %c0_19, %c0_20] : memref<1x8x128xf32, #tpu.memory_space<vmem>>, vector<1x8x128xf32>
      tpu.vector_store %arg4[%c0_18, %c0_19, %c0_20], %46 {strides = array<i32>} : memref<1x8x128xf32, #tpu.memory_space<vmem>>, vector<1x8x128xf32>,
    } else {
    }
    return
  }
  func.func @transform_0(%arg0: i32, %arg1: i32) -> (i32, i32) {
    %c0_i32 = arith.constant 0 : i32
    %c0_i32_0 = arith.constant 0 : i32
    return %arg0, %c0_i32 : i32, i32
  }
  func.func @transform_1(%arg0: i32, %arg1: i32) -> (i32, i32) {
    %c0_i32 = arith.constant 0 : i32
    %c0_i32_0 = arith.constant 0 : i32
    return %c0_i32, %arg1 : i32, i32
  }
  func.func @transform_2(%arg0: i32, %arg1: i32) -> (i32, i32, i32) {
    %c0_i32 = arith.constant 0 : i32
    %c0_i32_0 = arith.constant 0 : i32
    %c0_i32_1 = arith.constant 0 : i32
    return %arg0, %c0_i32, %c0_i32_0 : i32, i32, i32
  }
}

</mosaic_0001>

<llo_original>
// kernel: tpu_custom_call.1
$region0: #{tpu_custom_call.1}
  #allocation0 [shape = 'u32[]', space=smem, size = 0x4, offset = 0x4, fixed_abs, tag = 'smem constant byte address 0x4 - core index']
  #allocation1 [shape = 'u32[144,128]{1,0:T(1,128)}', space=vmem, size = 0x12000, scoped, tag = 'internal scratch']
  #allocation2 [shape = 'f32[128,128]{1,0:T(8,128)}', space=vmem, size = 0x10000, scoped, tag = 'scratch operand']
  %s0 = inlined_call_operand.vmem [shape: f32[128,1], index: 0, kind: input, shape index: {}]
  %s1 = inlined_call_operand.vmem [shape: f32[1,128], index: 1, kind: input, shape index: {}]
  %s2 = inlined_call_operand.hbm [shape: f32[1,8,128], index: 2, kind: output, shape index: {}]
  %s3 = sld [smem:[#allocation0]]
  $region26: #{tpu_custom_call.1} parent=0
    _
  %s5 = ssub.s32 1, %s3
  %s6 = scalar_select 0, %s5, %s3
  $region1: #{tpu_custom_call.1} parent=0
    #allocation3 [shape = 'u8[4096]{0}', space=vmem, size = 0x1000, scoped, tag = 'output window, operand 0, single buffered']
    #allocation4 [shape = 's32[1]{0}', space=sflag, size = 0x4, scoped, tag = 'scoped memory for tpu_custom_call.1']
    %7 = vsyncpa [#allocation4], 0
    // Predicated region
    $region2: #{tpu_custom_call.1} parent=1 // pred_check
      _
    $region3: #{tpu_custom_call.1} parent=1 // pred_check_branch
      %9 = sbr.rel (0) target = $region5
    $region4: #{tpu_custom_call.1} parent=1 // pred_region
      _
    $region5: #{tpu_custom_call.1} parent=1 // pred_fallthru
      _
    // Predicated region
    $region6: #{tpu_custom_call.1} parent=1 // pred_check
      _
    $region7: #{tpu_custom_call.1} parent=1 // pred_check_branch
      %11 = sbr.rel (0) target = $region9
    $region8: #{tpu_custom_call.1} parent=1 // pred_region
      _
    $region9: #{tpu_custom_call.1} parent=1 // pred_fallthru
      _
    %p12 = scmp.eq.s32.totalorder 0, 0
    // Predicated region
    $region10: #{tpu_custom_call.1} parent=1 // pred_check
      %p13 = pneg %p12
    $region11: #{tpu_custom_call.1} parent=1 // pred_check_branch
      %15 = sbr.rel (%p13) target = $region13
    $region12: #{tpu_custom_call.1} parent=1 // pred_region
      %16 = vst [vmem:[#allocation2] sm:$0xff] 0.0
      %17 = vst [vmem:[#allocation2 + $0x8] sm:$0xff] 0.0
      %18 = vst [vmem:[#allocation2 + $0x10] sm:$0xff] 0.0
      %19 = vst [vmem:[#allocation2 + $0x18] sm:$0xff] 0.0
      %20 = vst [vmem:[#allocation2 + $0x20] sm:$0xff] 0.0
      %21 = vst [vmem:[#allocation2 + $0x28] sm:$0xff] 0.0
      %22 = vst [vmem:[#allocation2 + $0x30] sm:$0xff] 0.0
      %23 = vst [vmem:[#allocation2 + $0x38] sm:$0xff] 0.0
      %24 = vst [vmem:[#allocation2 + $0x40] sm:$0xff] 0.0
      %25 = vst [vmem:[#allocation2 + $0x48] sm:$0xff] 0.0
      %26 = vst [vmem:[#allocation2 + $0x50] sm:$0xff] 0.0
      %27 = vst [vmem:[#allocation2 + $0x58] sm:$0xff] 0.0
      %28 = vst [vmem:[#allocation2 + $0x60] sm:$0xff] 0.0
      %29 = vst [vmem:[#allocation2 + $0x68] sm:$0xff] 0.0
      %30 = vst [vmem:[#allocation2 + $0x70] sm:$0xff] 0.0
      %31 = vst [vmem:[#allocation2 + $0x78] sm:$0xff] 0.0
    $region13: #{tpu_custom_call.1} parent=1 // pred_fallthru
      _
    %v32 = vld [vmem:[%s0] sm:$0xff]
    %v33 = vld [vmem:[%s0 + $0x8] sm:$0xff]
    %v34 = vld [vmem:[%s0 + $0x10] sm:$0xff]
    %v35 = vld [vmem:[%s0 + $0x18] sm:$0xff]
    %v36 = vld [vmem:[%s0 + $0x20] sm:$0xff]
    %v37 = vld [vmem:[%s0 + $0x28] sm:$0xff]
    %v38 = vld [vmem:[%s0 + $0x30] sm:$0xff]
    %v39 = vld [vmem:[%s0 + $0x38] sm:$0xff]
    %v40 = vld [vmem:[%s0 + $0x40] sm:$0xff]
    %v41 = vld [vmem:[%s0 + $0x48] sm:$0xff]
    %v42 = vld [vmem:[%s0 + $0x50] sm:$0xff]
    %v43 = vld [vmem:[%s0 + $0x58] sm:$0xff]
    %v44 = vld [vmem:[%s0 + $0x60] sm:$0xff]
    %v45 = vld [vmem:[%s0 + $0x68] sm:$0xff]
    %v46 = vld [vmem:[%s0 + $0x70] sm:$0xff]
    %v47 = vld [vmem:[%s0 + $0x78] sm:$0xff]
    %s48 = smul.u32 0, 128
    %v49 = vlaneseq
    %v50 = vshrl.u32 %v49, 7
    %v51 = vadd.s32 %v50, 8
    %v52 = vadd.s32 %v50, 16
    %v53 = vadd.s32 %v50, 24
    %v54 = vadd.s32 %v50, 32
    %v55 = vadd.s32 %v50, 40
    %v56 = vadd.s32 %v50, 48
    %v57 = vadd.s32 %v50, 56
    %v58 = vadd.s32 %v50, 64
    %v59 = vadd.s32 %v50, 72
    %v60 = vadd.s32 %v50, 80
    %v61 = vadd.s32 %v50, 88
    %v62 = vadd.s32 %v50, 96
    %v63 = vadd.s32 %v50, 104
    %v64 = vadd.s32 %v50, 112
    %v65 = vadd.s32 %v50, 120
    %v66 = vstv %s48
    %v67 = vadd.s32 %v66, %v50
    %v68 = vadd.s32 %v66, %v51
    %v69 = vadd.s32 %v66, %v52
    %v70 = vadd.s32 %v66, %v53
    %v71 = vadd.s32 %v66, %v54
    %v72 = vadd.s32 %v66, %v55
    %v73 = vadd.s32 %v66, %v56
    %v74 = vadd.s32 %v66, %v57
    %v75 = vadd.s32 %v66, %v58
    %v76 = vadd.s32 %v66, %v59
    %v77 = vadd.s32 %v66, %v60
    %v78 = vadd.s32 %v66, %v61
    %v79 = vadd.s32 %v66, %v62
    %v80 = vadd.s32 %v66, %v63
    %v81 = vadd.s32 %v66, %v64
    %v82 = vadd.s32 %v66, %v65
    %s83 = smul.u32 0, 128
    %v84 = vld [vmem:[%s1] sm:$0x1]
    %v85 = vlaneseq
    %v86 = vand.u32 %v85, 127
    %v87 = vstv %s83
    %v88 = vadd.s32 %v87, %v86
    %v90 = vlaneseq
    %v91 = vshrl.u32 %v90, 7
    %v92 = vsub.s32 0, %v91
    %v93 = vrot.slane %v84, %v92
    %96 = vset.pattern.permute.xlu0 0
    %97 = vperm.xlu0 %96, %v32
    %v98 = vpop.permute.xlu0 %97
    %101 = vset.pattern.permute.xlu0 0
    %102 = vperm.xlu0 %101, %v33
    %v103 = vpop.permute.xlu0 %102
    %106 = vset.pattern.permute.xlu0 0
    %107 = vperm.xlu0 %106, %v34
    %v108 = vpop.permute.xlu0 %107
    %111 = vset.pattern.permute.xlu0 0
    %112 = vperm.xlu0 %111, %v35
    %v113 = vpop.permute.xlu0 %112
    %116 = vset.pattern.permute.xlu0 0
    %117 = vperm.xlu0 %116, %v36
    %v118 = vpop.permute.xlu0 %117
    %121 = vset.pattern.permute.xlu0 0
    %122 = vperm.xlu0 %121, %v37
    %v123 = vpop.permute.xlu0 %122
    %126 = vset.pattern.permute.xlu0 0
    %127 = vperm.xlu0 %126, %v38
    %v128 = vpop.permute.xlu0 %127
    %131 = vset.pattern.permute.xlu0 0
    %132 = vperm.xlu0 %131, %v39
    %v133 = vpop.permute.xlu0 %132
    %136 = vset.pattern.permute.xlu0 0
    %137 = vperm.xlu0 %136, %v40
    %v138 = vpop.permute.xlu0 %137
    %141 = vset.pattern.permute.xlu0 0
    %142 = vperm.xlu0 %141, %v41
    %v143 = vpop.permute.xlu0 %142
    %146 = vset.pattern.permute.xlu0 0
    %147 = vperm.xlu0 %146, %v42
    %v148 = vpop.permute.xlu0 %147
    %151 = vset.pattern.permute.xlu0 0
    %152 = vperm.xlu0 %151, %v43
    %v153 = vpop.permute.xlu0 %152
    %156 = vset.pattern.permute.xlu0 0
    %157 = vperm.xlu0 %156, %v44
    %v158 = vpop.permute.xlu0 %157
    %161 = vset.pattern.permute.xlu0 0
    %162 = vperm.xlu0 %161, %v45
    %v163 = vpop.permute.xlu0 %162
    %166 = vset.pattern.permute.xlu0 0
    %167 = vperm.xlu0 %166, %v46
    %v168 = vpop.permute.xlu0 %167
    %171 = vset.pattern.permute.xlu0 0
    %172 = vperm.xlu0 %171, %v47
    %v173 = vpop.permute.xlu0 %172
    %vm175 = vcmp.lt.f32.partialorder %v93, %v98
    %vm176 = vcmp.lt.f32.partialorder %v93, %v103
    %vm177 = vcmp.lt.f32.partialorder %v93, %v108
    %vm178 = vcmp.lt.f32.partialorder %v93, %v113
    %vm179 = vcmp.lt.f32.partialorder %v93, %v118
    %vm180 = vcmp.lt.f32.partialorder %v93, %v123
    %vm181 = vcmp.lt.f32.partialorder %v93, %v128
    %vm182 = vcmp.lt.f32.partialorder %v93, %v133
    %vm183 = vcmp.lt.f32.partialorder %v93, %v138
    %vm184 = vcmp.lt.f32.partialorder %v93, %v143
    %vm185 = vcmp.lt.f32.partialorder %v93, %v148
    %vm186 = vcmp.lt.f32.partialorder %v93, %v153
    %vm187 = vcmp.lt.f32.partialorder %v93, %v158
    %vm188 = vcmp.lt.f32.partialorder %v93, %v163
    %vm189 = vcmp.lt.f32.partialorder %v93, %v168
    %vm190 = vcmp.lt.f32.partialorder %v93, %v173
    %vm191 = vcmp.eq.f32.partialorder %v93, %v98
    %vm192 = vcmp.eq.f32.partialorder %v93, %v103
    %vm193 = vcmp.eq.f32.partialorder %v93, %v108
    %vm194 = vcmp.eq.f32.partialorder %v93, %v113
    %vm195 = vcmp.eq.f32.partialorder %v93, %v118
    %vm196 = vcmp.eq.f32.partialorder %v93, %v123
    %vm197 = vcmp.eq.f32.partialorder %v93, %v128
    %vm198 = vcmp.eq.f32.partialorder %v93, %v133
    %vm199 = vcmp.eq.f32.partialorder %v93, %v138
    %vm200 = vcmp.eq.f32.partialorder %v93, %v143
    %vm201 = vcmp.eq.f32.partialorder %v93, %v148
    %vm202 = vcmp.eq.f32.partialorder %v93, %v153
    %vm203 = vcmp.eq.f32.partialorder %v93, %v158
    %vm204 = vcmp.eq.f32.partialorder %v93, %v163
    %vm205 = vcmp.eq.f32.partialorder %v93, %v168
    %vm206 = vcmp.eq.f32.partialorder %v93, %v173
    %vm207 = vcmp.lt.s32.totalorder %v88, %v67
    %vm208 = vcmp.lt.s32.totalorder %v88, %v68
    %vm209 = vcmp.lt.s32.totalorder %v88, %v69
    %vm210 = vcmp.lt.s32.totalorder %v88, %v70
    %vm211 = vcmp.lt.s32.totalorder %v88, %v71
    %vm212 = vcmp.lt.s32.totalorder %v88, %v72
    %vm213 = vcmp.lt.s32.totalorder %v88, %v73
    %vm214 = vcmp.lt.s32.totalorder %v88, %v74
    %vm215 = vcmp.lt.s32.totalorder %v88, %v75
    %vm216 = vcmp.lt.s32.totalorder %v88, %v76
    %vm217 = vcmp.lt.s32.totalorder %v88, %v77
    %vm218 = vcmp.lt.s32.totalorder %v88, %v78
    %vm219 = vcmp.lt.s32.totalorder %v88, %v79
    %vm220 = vcmp.lt.s32.totalorder %v88, %v80
    %vm221 = vcmp.lt.s32.totalorder %v88, %v81
    %vm222 = vcmp.lt.s32.totalorder %v88, %v82
    %vm223 = vmand %vm191, %vm207
    %vm224 = vmand %vm192, %vm208
    %vm225 = vmand %vm193, %vm209
    %vm226 = vmand %vm194, %vm210
    %vm227 = vmand %vm195, %vm211
    %vm228 = vmand %vm196, %vm212
    %vm229 = vmand %vm197, %vm213
    %vm230 = vmand %vm198, %vm214
    %vm231 = vmand %vm199, %vm215
    %vm232 = vmand %vm200, %vm216
    %vm233 = vmand %vm201, %vm217
    %vm234 = vmand %vm202, %vm218
    %vm235 = vmand %vm203, %vm219
    %vm236 = vmand %vm204, %vm220
    %vm237 = vmand %vm205, %vm221
    %vm238 = vmand %vm206, %vm222
    %vm239 = vmor %vm175, %vm223
    %vm240 = vmor %vm176, %vm224
    %vm241 = vmor %vm177, %vm225
    %vm242 = vmor %vm178, %vm226
    %vm243 = vmor %vm179, %vm227
    %vm244 = vmor %vm180, %vm228
    %vm245 = vmor %vm181, %vm229
    %vm246 = vmor %vm182, %vm230
    %vm247 = vmor %vm183, %vm231
    %vm248 = vmor %vm184, %vm232
    %vm249 = vmor %vm185, %vm233
    %vm250 = vmor %vm186, %vm234
    %vm251 = vmor %vm187, %vm235
    %vm252 = vmor %vm188, %vm236
    %vm253 = vmor %vm189, %vm237
    %vm254 = vmor %vm190, %vm238
    %v255 = vsel %vm239, 1, 0
    %v256 = vsel %vm240, 1, 0
    %v257 = vsel %vm241, 1, 0
    %v258 = vsel %vm242, 1, 0
    %v259 = vsel %vm243, 1, 0
    %v260 = vsel %vm244, 1, 0
    %v261 = vsel %vm245, 1, 0
    %v262 = vsel %vm246, 1, 0
    %v263 = vsel %vm247, 1, 0
    %v264 = vsel %vm248, 1, 0
    %v265 = vsel %vm249, 1, 0
    %v266 = vsel %vm250, 1, 0
    %v267 = vsel %vm251, 1, 0
    %v268 = vsel %vm252, 1, 0
    %v269 = vsel %vm253, 1, 0
    %v270 = vsel %vm254, 1, 0
    %v271 = vcvt.s32.f32 %v255
    %v272 = vcvt.s32.f32 %v256
    %v273 = vcvt.s32.f32 %v257
    %v274 = vcvt.s32.f32 %v258
    %v275 = vcvt.s32.f32 %v259
    %v276 = vcvt.s32.f32 %v260
    %v277 = vcvt.s32.f32 %v261
    %v278 = vcvt.s32.f32 %v262
    %v279 = vcvt.s32.f32 %v263
    %v280 = vcvt.s32.f32 %v264
    %v281 = vcvt.s32.f32 %v265
    %v282 = vcvt.s32.f32 %v266
    %v283 = vcvt.s32.f32 %v267
    %v284 = vcvt.s32.f32 %v268
    %v285 = vcvt.s32.f32 %v269
    %v286 = vcvt.s32.f32 %v270
    %v287 = vadd.f32 %v271, 0.0
    %v288 = vadd.f32 %v272, 0.0
    %v289 = vadd.f32 %v273, 0.0
    %v290 = vadd.f32 %v274, 0.0
    %v291 = vadd.f32 %v275, 0.0
    %v292 = vadd.f32 %v276, 0.0
    %v293 = vadd.f32 %v277, 0.0
    %v294 = vadd.f32 %v278, 0.0
    %v295 = vadd.f32 %v279, 0.0
    %v296 = vadd.f32 %v280, 0.0
    %v297 = vadd.f32 %v281, 0.0
    %v298 = vadd.f32 %v282, 0.0
    %v299 = vadd.f32 %v283, 0.0
    %v300 = vadd.f32 %v284, 0.0
    %v301 = vadd.f32 %v285, 0.0
    %v302 = vadd.f32 %v286, 0.0
    %v303 = vld [vmem:[#allocation2] sm:$0xff]
    %v304 = vld [vmem:[#allocation2 + $0x8] sm:$0xff]
    %v305 = vld [vmem:[#allocation2 + $0x10] sm:$0xff]
    %v306 = vld [vmem:[#allocation2 + $0x18] sm:$0xff]
    %v307 = vld [vmem:[#allocation2 + $0x20] sm:$0xff]
    %v308 = vld [vmem:[#allocation2 + $0x28] sm:$0xff]
    %v309 = vld [vmem:[#allocation2 + $0x30] sm:$0xff]
    %v310 = vld [vmem:[#allocation2 + $0x38] sm:$0xff]
    %v311 = vld [vmem:[#allocation2 + $0x40] sm:$0xff]
    %v312 = vld [vmem:[#allocation2 + $0x48] sm:$0xff]
    %v313 = vld [vmem:[#allocation2 + $0x50] sm:$0xff]
    %v314 = vld [vmem:[#allocation2 + $0x58] sm:$0xff]
    %v315 = vld [vmem:[#allocation2 + $0x60] sm:$0xff]
    %v316 = vld [vmem:[#allocation2 + $0x68] sm:$0xff]
    %v317 = vld [vmem:[#allocation2 + $0x70] sm:$0xff]
    %v318 = vld [vmem:[#allocation2 + $0x78] sm:$0xff]
    %v319 = vadd.f32 %v303, %v287
    %v320 = vadd.f32 %v304, %v288
    %v321 = vadd.f32 %v305, %v289
    %v322 = vadd.f32 %v306, %v290
    %v323 = vadd.f32 %v307, %v291
    %v324 = vadd.f32 %v308, %v292
    %v325 = vadd.f32 %v309, %v293
    %v326 = vadd.f32 %v310, %v294
    %v327 = vadd.f32 %v311, %v295
    %v328 = vadd.f32 %v312, %v296
    %v329 = vadd.f32 %v313, %v297
    %v330 = vadd.f32 %v314, %v298
    %v331 = vadd.f32 %v315, %v299
    %v332 = vadd.f32 %v316, %v300
    %v333 = vadd.f32 %v317, %v301
    %v334 = vadd.f32 %v318, %v302
    %335 = vst [vmem:[#allocation2] sm:$0xff] %v319
    %336 = vst [vmem:[#allocation2 + $0x8] sm:$0xff] %v320
    %337 = vst [vmem:[#allocation2 + $0x10] sm:$0xff] %v321
    %338 = vst [vmem:[#allocation2 + $0x18] sm:$0xff] %v322
    %339 = vst [vmem:[#allocation2 + $0x20] sm:$0xff] %v323
    %340 = vst [vmem:[#allocation2 + $0x28] sm:$0xff] %v324
    %341 = vst [vmem:[#allocation2 + $0x30] sm:$0xff] %v325
    %342 = vst [vmem:[#allocation2 + $0x38] sm:$0xff] %v326
    %343 = vst [vmem:[#allocation2 + $0x40] sm:$0xff] %v327
    %344 = vst [vmem:[#allocation2 + $0x48] sm:$0xff] %v328
    %345 = vst [vmem:[#allocation2 + $0x50] sm:$0xff] %v329
    %346 = vst [vmem:[#allocation2 + $0x58] sm:$0xff] %v330
    %347 = vst [vmem:[#allocation2 + $0x60] sm:$0xff] %v331
    %348 = vst [vmem:[#allocation2 + $0x68] sm:$0xff] %v332
    %349 = vst [vmem:[#allocation2 + $0x70] sm:$0xff] %v333
    %350 = vst [vmem:[#allocation2 + $0x78] sm:$0xff] %v334
    // Predicated region
    $region14: #{tpu_custom_call.1} parent=1 // pred_check
      %p351 = pneg %p12
    $region15: #{tpu_custom_call.1} parent=1 // pred_check_branch
      %353 = sbr.rel (%p351) target = $region17
    $region16: #{tpu_custom_call.1} parent=1 // pred_region
      %v354 = vld [vmem:[#allocation2] sm:$0xff]
      %v355 = vld [vmem:[#allocation2 + $0x8] sm:$0xff]
      %v356 = vld [vmem:[#allocation2 + $0x10] sm:$0xff]
      %v357 = vld [vmem:[#allocation2 + $0x18] sm:$0xff]
      %v358 = vld [vmem:[#allocation2 + $0x20] sm:$0xff]
      %v359 = vld [vmem:[#allocation2 + $0x28] sm:$0xff]
      %v360 = vld [vmem:[#allocation2 + $0x30] sm:$0xff]
      %v361 = vld [vmem:[#allocation2 + $0x38] sm:$0xff]
      %v362 = vld [vmem:[#allocation2 + $0x40] sm:$0xff]
      %v363 = vld [vmem:[#allocation2 + $0x48] sm:$0xff]
      %v364 = vld [vmem:[#allocation2 + $0x50] sm:$0xff]
      %v365 = vld [vmem:[#allocation2 + $0x58] sm:$0xff]
      %v366 = vld [vmem:[#allocation2 + $0x60] sm:$0xff]
      %v367 = vld [vmem:[#allocation2 + $0x68] sm:$0xff]
      %v368 = vld [vmem:[#allocation2 + $0x70] sm:$0xff]
      %v369 = vld [vmem:[#allocation2 + $0x78] sm:$0xff]
      %370 = vadd.xlane.f32.xlu0 %v354
      %v371 = vpop.xlane.xlu0 %370
      %372 = vadd.xlane.f32.xlu0 %v355
      %v373 = vpop.xlane.xlu0 %372
      %374 = vadd.xlane.f32.xlu0 %v356
      %v375 = vpop.xlane.xlu0 %374
      %376 = vadd.xlane.f32.xlu0 %v357
      %v377 = vpop.xlane.xlu0 %376
      %378 = vadd.xlane.f32.xlu0 %v358
      %v379 = vpop.xlane.xlu0 %378
      %380 = vadd.xlane.f32.xlu0 %v359
      %v381 = vpop.xlane.xlu0 %380
      %382 = vadd.xlane.f32.xlu0 %v360
      %v383 = vpop.xlane.xlu0 %382
      %384 = vadd.xlane.f32.xlu0 %v361
      %v385 = vpop.xlane.xlu0 %384
      %386 = vadd.xlane.f32.xlu0 %v362
      %v387 = vpop.xlane.xlu0 %386
      %388 = vadd.xlane.f32.xlu0 %v363
      %v389 = vpop.xlane.xlu0 %388
      %390 = vadd.xlane.f32.xlu0 %v364
      %v391 = vpop.xlane.xlu0 %390
      %392 = vadd.xlane.f32.xlu0 %v365
      %v393 = vpop.xlane.xlu0 %392
      %394 = vadd.xlane.f32.xlu0 %v366
      %v395 = vpop.xlane.xlu0 %394
      %396 = vadd.xlane.f32.xlu0 %v367
      %v397 = vpop.xlane.xlu0 %396
      %398 = vadd.xlane.f32.xlu0 %v368
      %v399 = vpop.xlane.xlu0 %398
      %400 = vadd.xlane.f32.xlu0 %v369
      %v401 = vpop.xlane.xlu0 %400
      %vm402 = vcmp.lt.f32.partialorder %v371, 4.0
      %vm403 = vcmp.lt.f32.partialorder %v373, 4.0
      %vm404 = vcmp.lt.f32.partialorder %v375, 4.0
      %vm405 = vcmp.lt.f32.partialorder %v377, 4.0
      %vm406 = vcmp.lt.f32.partialorder %v379, 4.0
      %vm407 = vcmp.lt.f32.partialorder %v381, 4.0
      %vm408 = vcmp.lt.f32.partialorder %v383, 4.0
      %vm409 = vcmp.lt.f32.partialorder %v385, 4.0
      %vm410 = vcmp.lt.f32.partialorder %v387, 4.0
      %vm411 = vcmp.lt.f32.partialorder %v389, 4.0
      %vm412 = vcmp.lt.f32.partialorder %v391, 4.0
      %vm413 = vcmp.lt.f32.partialorder %v393, 4.0
      %vm414 = vcmp.lt.f32.partialorder %v395, 4.0
      %vm415 = vcmp.lt.f32.partialorder %v397, 4.0
      %vm416 = vcmp.lt.f32.partialorder %v399, 4.0
      %vm417 = vcmp.lt.f32.partialorder %v401, 4.0
      %v418 = vsel %vm402, %v32, 0.0
      %v419 = vsel %vm403, %v33, 0.0
      %v420 = vsel %vm404, %v34, 0.0
      %v421 = vsel %vm405, %v35, 0.0
      %v422 = vsel %vm406, %v36, 0.0
      %v423 = vsel %vm407, %v37, 0.0
      %v424 = vsel %vm408, %v38, 0.0
      %v425 = vsel %vm409, %v39, 0.0
      %v426 = vsel %vm410, %v40, 0.0
      %v427 = vsel %vm411, %v41, 0.0
      %v428 = vsel %vm412, %v42, 0.0
      %v429 = vsel %vm413, %v43, 0.0
      %v430 = vsel %vm414, %v44, 0.0
      %v431 = vsel %vm415, %v45, 0.0
      %v432 = vsel %vm416, %v46, 0.0
      %v433 = vsel %vm417, %v47, 0.0
      %vm434 = vcmask 7168
      %v435 = vsel %vm434, %v418, 0.0
      %v436 = vsel %vm434, %v419, 0.0
      %v437 = vadd.f32 %v435, %v436
      %v438 = vsel %vm434, %v420, 0.0
      %v439 = vadd.f32 %v437, %v438
      %v440 = vsel %vm434, %v421, 0.0
      %v441 = vadd.f32 %v439, %v440
      %v442 = vsel %vm434, %v422, 0.0
      %v443 = vadd.f32 %v441, %v442
      %v444 = vsel %vm434, %v423, 0.0
      %v445 = vadd.f32 %v443, %v444
      %v446 = vsel %vm434, %v424, 0.0
      %v447 = vadd.f32 %v445, %v446
      %v448 = vsel %vm434, %v425, 0.0
      %v449 = vadd.f32 %v447, %v448
      %v450 = vsel %vm434, %v426, 0.0
      %v451 = vadd.f32 %v449, %v450
      %v452 = vsel %vm434, %v427, 0.0
      %v453 = vadd.f32 %v451, %v452
      %v454 = vsel %vm434, %v428, 0.0
      %v455 = vadd.f32 %v453, %v454
      %v456 = vsel %vm434, %v429, 0.0
      %v457 = vadd.f32 %v455, %v456
      %v458 = vsel %vm434, %v430, 0.0
      %v459 = vadd.f32 %v457, %v458
      %v460 = vsel %vm434, %v431, 0.0
      %v461 = vadd.f32 %v459, %v460
      %v462 = vsel %vm434, %v432, 0.0
      %v463 = vadd.f32 %v461, %v462
      %v464 = vsel %vm434, %v433, 0.0
      %v465 = vadd.f32 %v463, %v464
      %466 = vadd.xlane.f32.xlu0 %v465
      %v467 = vpop.xlane.xlu0 %466
      %v468 = vrot.slane %v467, 4
      %v469 = vadd.f32 %v467, %v468
      %v470 = vrot.slane %v469, 2
      %v471 = vadd.f32 %v469, %v470
      %v472 = vrot.slane %v471, 1
      %v473 = vadd.f32 %v471, %v472
      %s474 = vtos %v473
      %v475 = vstv %s474
      %476 = vst [vmem:[#allocation3] sm:$0xff] %v475
    $region17: #{tpu_custom_call.1} parent=1 // pred_fallthru
      _
    // Predicated region
    $region18: #{tpu_custom_call.1} parent=1 // pred_check
      _
    $region19: #{tpu_custom_call.1} parent=1 // pred_check_branch
      %478 = sbr.rel (0) target = $region21
    $region20: #{tpu_custom_call.1} parent=1 // pred_region
      %s480 = ssub.s32 128, 128
      %481 = vsyncadd [#allocation4], %s480
      %s483 = sshll.u32 [#allocation3], 4
      %s484 = int_to_ptr.vmem [resolvable:$true] %s483
      %486 = dma.vmem_to_hbm [thread:$0]  %s484, 128, %s2, [#allocation4]
    $region21: #{tpu_custom_call.1} parent=1 // pred_fallthru
      _
    // Predicated region
    $region22: #{tpu_custom_call.1} parent=1 // pred_check
      _
    $region23: #{tpu_custom_call.1} parent=1 // pred_check_branch
      %488 = sbr.rel (0) target = $region25
    $region24: #{tpu_custom_call.1} parent=1 // pred_region
      %489 = dma.done [#allocation4], 128
    $region25: #{tpu_custom_call.1} parent=1 // pred_fallthru
      _
    %490 = vsyncpa [#allocation4], 1

</llo_original>
